<compile_context>
chip_gen: v7x
topology: tpu7x:2x2x1
jax: 0.10.0
libtpu: 0.0.40
codegen_flags: <defaults>
</compile_context>

<pallas_src>
import math
import functools

import jax
import jax.numpy as jnp
from jax.experimental import pallas as pl
from jax.experimental.pallas import tpu as pltpu


# ----------------------------------------------------------------------------
# helpers
# ----------------------------------------------------------------------------
def _layernorm(x, g, b, eps=1e-5):
    mu = jnp.mean(x, axis=-1, keepdims=True)
    var = jnp.mean((x - mu) ** 2, axis=-1, keepdims=True)
    return (x - mu) * jax.lax.rsqrt(var + eps) * g + b


def _gelu_exact(x):
    # exact (erf) GELU — used only in plain-JAX glue (matches nn.GELU()).
    return 0.5 * x * (1.0 + jax.lax.erf(x * 0.7071067811865476))


def _gelu_approx(x):
    # TODO(synk): tanh-approx GELU inside kernels (erf has no guaranteed Mosaic
    # lowering); max abs deviation vs nn.GELU() is ~3e-3.
    c = 0.7978845608028654  # sqrt(2/pi)
    return 0.5 * x * (1.0 + jnp.tanh(c * (x + 0.044715 * x * x * x)))


def _tile(dim, target, align):
    """Largest block size <= target that is a multiple of `align` and divides
    `dim`; falls back to the full dim (block == array dim is always legal)."""
    if dim <= target:
        return dim
    t = (target // align) * align
    while t >= align:
        if dim % t == 0:
            return t
        t -= align
    return dim


def _batch_block(B, max_bblk):
    """Largest divisor of B that is <= max_bblk."""
    return max(d for d in range(1, min(B, max_bblk) + 1) if B % d == 0)


# ----------------------------------------------------------------------------
# tiled linear kernels: out = x @ w (+ b), bf16 inputs, f32 accumulation
# ----------------------------------------------------------------------------
def _matmul_kernel(x_ref, w_ref, o_ref, acc_ref):
    @pl.when(pl.program_id(2) == 0)
    def _():
        acc_ref[...] = jnp.zeros_like(acc_ref)

    acc_ref[...] += jnp.dot(x_ref[...], w_ref[...],
                            preferred_element_type=jnp.float32)

    @pl.when(pl.program_id(2) == pl.num_programs(2) - 1)
    def _():
        o_ref[...] = acc_ref[...].astype(o_ref.dtype)


def _matmul_bias_kernel(x_ref, w_ref, b_ref, o_ref, acc_ref):
    @pl.when(pl.program_id(2) == 0)
    def _():
        acc_ref[...] = jnp.zeros_like(acc_ref)

    acc_ref[...] += jnp.dot(x_ref[...], w_ref[...],
                            preferred_element_type=jnp.float32)

    @pl.when(pl.program_id(2) == pl.num_programs(2) - 1)
    def _():
        o_ref[...] = (acc_ref[...] + b_ref[...]).astype(o_ref.dtype)


def pallas_linear(x, w, b=None, *, tm=256, tn=256, tk=512):
    """x: [M, K], w: [K, N], b: [N] or None -> [M, N] float32."""
    M, K = x.shape
    N = w.shape[1]
    bm = _tile(M, tm, 8)
    bn = _tile(N, tn, 128)
    bk = _tile(K, tk, 128)
    grid = (M // bm, N // bn, K // bk)

    xb = x.astype(jnp.bfloat16)
    wb = w.astype(jnp.bfloat16)

    in_specs = [pl.BlockSpec((bm, bk), lambda i, j, k: (i, k)),
                pl.BlockSpec((bk, bn), lambda i, j, k: (k, j))]
    args = [xb, wb]
    if b is None:
        kernel = _matmul_kernel          # no synthesized zero-bias DMA/add
    else:
        kernel = _matmul_bias_kernel
        in_specs.append(pl.BlockSpec((1, bn), lambda i, j, k: (0, j)))
        args.append(b.reshape(1, N).astype(jnp.float32))

    return pl.pallas_call(
        kernel,
        grid=grid,
        in_specs=in_specs,
        out_specs=pl.BlockSpec((bm, bn), lambda i, j, k: (i, j)),
        out_shape=jax.ShapeDtypeStruct((M, N), jnp.float32),
        scratch_shapes=[pltpu.VMEM((bm, bn), jnp.float32)],
        compiler_params=pltpu.CompilerParams(
            dimension_semantics=("parallel", "parallel", "arbitrary")),
    )(*args)


# ----------------------------------------------------------------------------
# fused patch embedding: Conv2d-as-matmul + bias + positional-embedding add
# gridded over batch; the [bblk, N, E] result never leaves VMEM in between
# ----------------------------------------------------------------------------
def _patch_embed_kernel(x_ref, w_ref, b_ref, pos_ref, o_ref):
    x = x_ref[...]                       # [Bb, N, CPP] bf16
    Bb, N, CPP = x.shape
    h = jnp.dot(x.reshape(Bb * N, CPP), w_ref[...],
                preferred_element_type=jnp.float32)        # [Bb*N, E] f32
    h = h + b_ref[...]                                     # conv bias [1, E]
    h = h.reshape(Bb, N, -1) + pos_ref[...][None]          # pos add [N, E]
    o_ref[...] = h.astype(o_ref.dtype)


def pallas_patch_embed(patches, wconv, bconv, pos, *, max_bblk=4):
    """patches: [B, N, CPP], wconv: [CPP, E], bconv: [E], pos: [N, E]
    -> [B, N, E] float32 (= Conv2d(k=P,s=P) tokens + positional embedding)."""
    B, N, CPP = patches.shape
    E = wconv.shape[1]
    bblk = _batch_block(B, max_bblk)
    # TODO(synk): for very large N / CPP, additionally tile the token axis.
    return pl.pallas_call(
        _patch_embed_kernel,
        grid=(B // bblk,),
        in_specs=[pl.BlockSpec((bblk, N, CPP), lambda b: (b, 0, 0)),
                  pl.BlockSpec((CPP, E), lambda b: (0, 0)),
                  pl.BlockSpec((1, E), lambda b: (0, 0)),
                  pl.BlockSpec((N, E), lambda b: (0, 0))],
        out_specs=pl.BlockSpec((bblk, N, E), lambda b: (b, 0, 0)),
        out_shape=jax.ShapeDtypeStruct((B, N, E), jnp.float32),
        compiler_params=pltpu.CompilerParams(
            dimension_semantics=("parallel",)),
    )(patches.astype(jnp.bfloat16), wconv.astype(jnp.bfloat16),
      bconv.reshape(1, E).astype(jnp.float32), pos.astype(jnp.float32))


# ----------------------------------------------------------------------------
# fused output_projection (E->H, no bias) + ConvTranspose2d-as-matmul
# (H -> C*P*P) + deconv channel bias; intermediate [tm, H] never touches HBM
# ----------------------------------------------------------------------------
def _proj_deconv_kernel(x_ref, wp_ref, wd_ref, bd_ref, o_ref):
    h = jnp.dot(x_ref[...], wp_ref[...], preferred_element_type=jnp.float32)
    o = jnp.dot(h.astype(jnp.bfloat16), wd_ref[...],
                preferred_element_type=jnp.float32)
    o_ref[...] = (o + bd_ref[...]).astype(o_ref.dtype)


def pallas_proj_deconv(x, wp, wd, bd, *, tm=256):
    """x: [M, E], wp: [E, H], wd: [H, CPP], bd: [CPP] -> [M, CPP] float32."""
    M, E = x.shape
    H = wp.shape[1]
    CPP = wd.shape[1]
    bm = _tile(M, tm, 8)
    return pl.pallas_call(
        _proj_deconv_kernel,
        grid=(M // bm,),
        in_specs=[pl.BlockSpec((bm, E), lambda i: (i, 0)),
                  pl.BlockSpec((E, H), lambda i: (0, 0)),
                  pl.BlockSpec((H, CPP), lambda i: (0, 0)),
                  pl.BlockSpec((1, CPP), lambda i: (0, 0))],
        out_specs=pl.BlockSpec((bm, CPP), lambda i: (i, 0)),
        out_shape=jax.ShapeDtypeStruct((M, CPP), jnp.float32),
        compiler_params=pltpu.CompilerParams(
            dimension_semantics=("parallel",)),
    )(x.astype(jnp.bfloat16), wp.astype(jnp.bfloat16),
      wd.astype(jnp.bfloat16), bd.reshape(1, CPP).astype(jnp.float32))


# ----------------------------------------------------------------------------
# fused AttentionBlock kernel (bblk batch elements per grid step)
# ----------------------------------------------------------------------------
def _attn_block_kernel(num_heads,
                       x_ref, temb_ref,
                       g1_ref, be1_ref,
                       wqkv_ref, bqkv_ref, wo_ref, bo_ref,
                       g2_ref, be2_ref,
                       wm1_ref, bm1_ref, wm2_ref, bm2_ref,
                       o_ref):
    x = x_ref[...].astype(jnp.float32)        # [Bb, N, E]
    temb = temb_ref[...].astype(jnp.float32)  # [Bb, 1, E]
    Bb, N, E = x.shape
    Hh = num_heads
    hd = E // Hh
    scale = 1.0 / math.sqrt(hd)

    # data + time embedding, LayerNorm 1 (f32 statistics)
    xe = (x + temb).reshape(Bb * N, E)
    h = _layernorm(xe, g1_ref[...], be1_ref[...])            # [Bb*N, E]

    # fused QKV projection (bf16 operands, f32 accumulation)
    qkv = jnp.dot(h.astype(jnp.bfloat16), wqkv_ref[...],
                  preferred_element_type=jnp.float32) + bqkv_ref[...]
    q = qkv[:, :E] * scale
    k = qkv[:, E:2 * E]
    v = qkv[:, 2 * E:]

    def to_heads(a):
        # [Bb*N, E] -> [Bb*Hh, N, hd], heads on the leading (batch) axis
        return (a.reshape(Bb, N, Hh, hd)
                 .transpose(0, 2, 1, 3)
                 .reshape(Bb * Hh, N, hd)
                 .astype(jnp.bfloat16))

    qh, kh, vh = to_heads(q), to_heads(k), to_heads(v)

    # batched scores over (batch*heads): [Bb*Hh, N, N]
    s = jax.lax.dot_general(qh, kh, (((2,), (2,)), ((0,), (0,))),
                            preferred_element_type=jnp.float32)
    s = s - jnp.max(s, axis=-1, keepdims=True)
    p = jnp.exp(s)
    p = p * pl.reciprocal(jnp.sum(p, axis=-1, keepdims=True), approx=True)

    # batched p @ v: [Bb*Hh, N, hd]
    o = jax.lax.dot_general(p.astype(jnp.bfloat16), vh,
                            (((2,), (1,)), ((0,), (0,))),
                            preferred_element_type=jnp.float32)
    attn = (o.reshape(Bb, Hh, N, hd)
              .transpose(0, 2, 1, 3)
              .reshape(Bb * N, E))
    attn_o = jnp.dot(attn.astype(jnp.bfloat16), wo_ref[...],
                     preferred_element_type=jnp.float32) + bo_ref[...]

    # residual around attention uses the LN1 output, exactly as in the module
    attn_res = h + attn_o
    nres = _layernorm(attn_res, g2_ref[...], be2_ref[...])

    # MLP: Linear(E,H) -> GELU -> Linear(H,E)   (dropouts are identity)
    m = jnp.dot(nres.astype(jnp.bfloat16), wm1_ref[...],
                preferred_element_type=jnp.float32) + bm1_ref[...]
    m = _gelu_approx(m)
    m = jnp.dot(m.astype(jnp.bfloat16), wm2_ref[...],
                preferred_element_type=jnp.float32) + bm2_ref[...]

    o_ref[...] = (attn_res + m).reshape(Bb, N, E).astype(o_ref.dtype)


def attention_block(x, temb, p, num_heads, *, max_bblk=4):
    """x: [B, N, E], temb: [B, 1, E], p: dict of block params -> [B, N, E]."""
    B, N, E = x.shape
    # process several batch elements per grid step (amortize per-step overhead)
    bblk = _batch_block(B, max_bblk)
    grid = (B // bblk,)

    kern = functools.partial(_attn_block_kernel, num_heads)

    bf = lambda a: a.astype(jnp.bfloat16)
    f32 = lambda a: a.astype(jnp.float32)
    # matmul weights in bf16; LN params and biases in f32
    param_list = [f32(p["g1"]), f32(p["b1"]),
                  bf(p["wqkv"]), f32(p["bqkv"]), bf(p["wo"]), f32(p["bo"]),
                  f32(p["g2"]), f32(p["b2"]),
                  bf(p["wm1"]), f32(p["bm1"]), bf(p["wm2"]), f32(p["bm2"])]

    def full_spec(a):
        nd = a.ndim
        return pl.BlockSpec(a.shape, lambda b, _nd=nd: (0,) * _nd)

    in_specs = [pl.BlockSpec((bblk, N, E), lambda b: (b, 0, 0)),
                pl.BlockSpec((bblk, 1, E), lambda b: (b, 0, 0))]
    in_specs += [full_spec(a) for a in param_list]
    # NOTE: block params have a constant index_map, so Pallas only DMAs them
    # once; at very large E/H they could additionally be single-buffered.

    return pl.pallas_call(
        kern,
        grid=grid,
        in_specs=in_specs,
        out_specs=pl.BlockSpec((bblk, N, E), lambda b: (b, 0, 0)),
        out_shape=jax.ShapeDtypeStruct((B, N, E), jnp.float32),
        compiler_params=pltpu.CompilerParams(
            dimension_semantics=("parallel",)),
    )(x.astype(jnp.float32), temb.astype(jnp.float32), *param_list)
    # TODO(synk): for large token counts, tile over the key axis (flash-style
    # online softmax) instead of materializing the full [N, N] score matrix.


# ----------------------------------------------------------------------------
# sinusoidal position / time embedding (plain JAX glue)
# ----------------------------------------------------------------------------
def sinusoidal_embedding(t, dim):
    half = dim // 2
    denom = max(half - 1, 1)
    freqs = jnp.exp(-math.log(10000.0) *
                    jnp.arange(half, dtype=jnp.float32) / denom)
    args = t.astype(jnp.float32)[:, None] * freqs[None, :]
    return jnp.concatenate([jnp.sin(args), jnp.cos(args)], axis=-1)


# ----------------------------------------------------------------------------
# parameter construction (deterministic, synthetic)
# ----------------------------------------------------------------------------
def build_params(key, *, C, P, E, H, depth, pos_dim, time_dim):
    state = [key]

    def nrm(shape, scale=0.02):
        state[0], sub = jax.random.split(state[0])
        return scale * jax.random.normal(sub, shape, dtype=jnp.float32)

    params = {
        # PatchEmbedding: Conv2d(C, E, k=P, s=P) -> weight [E, C, P, P], bias [E]
        "patch_w": nrm((E, C, P, P)),
        "patch_b": nrm((E,)),
        # positional embedding: Linear(pos_dim, E) with bias
        "pos_w": nrm((pos_dim, E)),
        "pos_b": nrm((E,)),
        # output projection: Linear(E, H, bias=False)
        "proj_w": nrm((E, H)),
        # output ConvTranspose2d(H, C, k=P, s=P): weight [H, C, P, P], bias [C]
        "deconv_w": nrm((H, C, P, P)),
        "deconv_b": nrm((C,)),
        "blocks": [],
    }
    for _ in range(depth):
        blk = {
            # time_transform Linear(time_dim, E, bias=False)
            "wt": nrm((time_dim, E)),
            "g1": jnp.ones((1, E), jnp.float32),
            "b1": jnp.zeros((1, E), jnp.float32),
            # MHA in_proj (stored pre-transposed: [E, 3E]) + bias
            "wqkv": nrm((E, 3 * E)),
            "bqkv": nrm((1, 3 * E)),
            # MHA out_proj [E, E] + bias
            "wo": nrm((E, E)),
            "bo": nrm((1, E)),
            "g2": jnp.ones((1, E), jnp.float32),
            "b2": jnp.zeros((1, E), jnp.float32),
            # MLP
            "wm1": nrm((E, H)),
            "bm1": nrm((1, H)),
            "wm2": nrm((H, E)),
            "bm2": nrm((1, E)),
        }
        params["blocks"].append(blk)
    return params


# ----------------------------------------------------------------------------
# full VisionTransformer forward
# ----------------------------------------------------------------------------
def vit_forward(params, x, t, *, patch_size, num_heads, pos_dim, time_dim):
    B, C, Himg, Wimg = x.shape
    P = patch_size
    Hp, Wp = Himg // P, Wimg // P
    N = Hp * Wp
    E = params["patch_w"].shape[0]

    # --- positional embedding (sinusoidal -> Linear -> GELU), shared over B
    pos_sin = sinusoidal_embedding(jnp.arange(N), pos_dim)       # [N, pos_dim]
    pos = _gelu_exact(pallas_linear(pos_sin, params["pos_w"], params["pos_b"]))

    # --- patch embedding: Conv2d(k=P, s=P) as a matmul over flattened patches,
    #     fused with the conv bias and the positional-embedding add
    patches = x.reshape(B, C, Hp, P, Wp, P).transpose(0, 2, 4, 1, 3, 5)
    patches = patches.reshape(B, N, C * P * P)                   # [B, N, C*P*P]
    wconv = params["patch_w"].reshape(E, C * P * P).T            # [C*P*P, E]
    emb = pallas_patch_embed(patches, wconv, params["patch_b"], pos)  # [B, N, E]

    # --- all per-depth time transforms in ONE matmul (weights concatenated)
    depth = len(params["blocks"])
    t_sin = sinusoidal_embedding(t, time_dim)                    # [B, time_dim]
    wt_all = jnp.concatenate([blk["wt"] for blk in params["blocks"]], axis=1)
    temb_all = _gelu_exact(pallas_linear(t_sin, wt_all))         # [B, depth*E]

    # --- transformer blocks
    for d, blk in enumerate(params["blocks"]):
        temb = temb_all[:, d * E:(d + 1) * E].reshape(B, 1, E)
        emb = attention_block(emb, temb, blk, num_heads)

    # --- fused output projection (no bias) + ConvTranspose2d-as-matmul + bias
    Hdim = params["proj_w"].shape[1]
    wdec = params["deconv_w"].reshape(Hdim, C * P * P)           # [H, C*P*P]
    bdec = jnp.repeat(params["deconv_b"], P * P)                 # [C*P*P]
    out = pallas_proj_deconv(emb.reshape(B * N, E), params["proj_w"],
                             wdec, bdec)

    # --- un-patch back to NCHW
    out = out.reshape(B, Hp, Wp, C, P, P).transpose(0, 3, 1, 4, 2, 5)
    out = out.reshape(B, C, Himg, Wimg)
    return out

# TODO(synk): dropout layers (dropout=0.2 in the module) are inference-mode
# identities; attn_weights (unused by VisionTransformer) are not materialized.


# ----------------------------------------------------------------------------
if __name__ == "__main__":
    # small config consistent with the module's constructor
    PATCH = 4
    INPUT_SHAPES = [16, 16]
    C = 4
    E = 32           # embedding_dim
    H = 64           # hidden_dim
    DEPTH = 2        # transformer_depth
    POS_DIM = 32
    TIME_DIM = 32
    HEADS = 4
    B = 2

    key = jax.random.PRNGKey(0)
    kx, kt, kp = jax.random.split(key, 3)
    x = jax.random.normal(kx, (B, C, INPUT_SHAPES[0], INPUT_SHAPES[1]),
                          dtype=jnp.float32)
    t = jax.random.randint(kt, (B,), 0, 1000)

    params = build_params(kp, C=C, P=PATCH, E=E, H=H, depth=DEPTH,
                          pos_dim=POS_DIM, time_dim=TIME_DIM)

    out = vit_forward(params, x, t, patch_size=PATCH, num_heads=HEADS,
                      pos_dim=POS_DIM, time_dim=TIME_DIM)
    out = jax.block_until_ready(out)
    assert out.shape == x.shape, (out.shape, x.shape)
    assert bool(jnp.all(jnp.isfinite(out)))
    print("KERNEL_OK")
</pallas_src>

<mosaic_0001>
module attributes {stable_mosaic.version = 11 : i64} {
  func.func @_matmul_bias_kernel(%arg0: i32, %arg1: i32, %arg2: i32, %arg3: memref<16x32xbf16, #tpu.memory_space<vmem>>, %arg4: memref<32x32xbf16, #tpu.memory_space<vmem>>, %arg5: memref<1x32xf32, #tpu.memory_space<vmem>>, %arg6: memref<16x32xf32, #tpu.memory_space<vmem>>, %arg7: memref<16x32xf32, #tpu.memory_space<vmem>>) attributes {dimension_semantics = [#tpu.dimension_semantics<parallel>, #tpu.dimension_semantics<parallel>, #tpu.dimension_semantics<arbitrary>], iteration_bounds = array<i64: 1, 1, 1>, scalar_prefetch = 0 : i64, scratch_operands = 1 : i64, tpu.core_type = #tpu.core_type<tc>, window_params = [{transform_indices = @transform_0, window_bounds = array<i64: 16, 32>}, {transform_indices = @transform_1, window_bounds = array<i64: 32, 32>}, {transform_indices = @transform_2, window_bounds = array<i64: 1, 32>}, {transform_indices = @transform_3, window_bounds = array<i64: 16, 32>}]} {
    %c0_i32 = arith.constant 0 : i32
    %0 = arith.cmpi eq, %arg2, %c0_i32 : i32
    %1 = arith.extui %0 : i1 to i32
    %c0_i32_0 = arith.constant 0 : i32
    %2 = arith.cmpi ne, %1, %c0_i32_0 : i32
    scf.if %2 {
      %cst_10 = arith.constant 0.000000e+00 : f32
      %12 = vector.broadcast %cst_10 : f32 to vector<16x32xf32>
      %c0_11 = arith.constant 0 : index
      %c0_12 = arith.constant 0 : index
      %13 = vector.load %arg7[%c0_11, %c0_12] : memref<16x32xf32, #tpu.memory_space<vmem>>, vector<16x32xf32>
      tpu.vector_store %arg7[%c0_11, %c0_12], %12 {strides = array<i32>} : memref<16x32xf32, #tpu.memory_space<vmem>>, vector<16x32xf32>,
    } else {
    }
    %c0 = arith.constant 0 : index
    %c0_1 = arith.constant 0 : index
    %3 = vector.load %arg7[%c0, %c0_1] : memref<16x32xf32, #tpu.memory_space<vmem>>, vector<16x32xf32>
    %c0_2 = arith.constant 0 : index
    %c0_3 = arith.constant 0 : index
    %4 = vector.load %arg3[%c0_2, %c0_3] : memref<16x32xbf16, #tpu.memory_space<vmem>>, vector<16x32xbf16>
    %c0_4 = arith.constant 0 : index
    %c0_5 = arith.constant 0 : index
    %5 = vector.load %arg4[%c0_4, %c0_5] : memref<32x32xbf16, #tpu.memory_space<vmem>>, vector<32x32xbf16>
    %cst = arith.constant dense<0.000000e+00> : vector<16x32xf32>
    %6 = tpu.matmul %4, %5, %cst {dimension_numbers = #tpu.dot_dimension_numbers<[1], [0], [0], [1], [0, 0, 1, 1], [], []>} : vector<16x32xbf16>, vector<32x32xbf16>, vector<16x32xf32> -> vector<16x32xf32>
    %7 = arith.addf %3, %6 : vector<16x32xf32>
    %c0_6 = arith.constant 0 : index
    %c0_7 = arith.constant 0 : index
    %8 = vector.load %arg7[%c0_6, %c0_7] : memref<16x32xf32, #tpu.memory_space<vmem>>, vector<16x32xf32>
    tpu.vector_store %arg7[%c0_6, %c0_7], %7 {strides = array<i32>} : memref<16x32xf32, #tpu.memory_space<vmem>>, vector<16x32xf32>,
    %c0_i32_8 = arith.constant 0 : i32
    %9 = arith.cmpi eq, %arg2, %c0_i32_8 : i32
    %10 = arith.extui %9 : i1 to i32
    %c0_i32_9 = arith.constant 0 : i32
    %11 = arith.cmpi ne, %10, %c0_i32_9 : i32
    scf.if %11 {
      %c0_10 = arith.constant 0 : index
      %c0_11 = arith.constant 0 : index
      %12 = vector.load %arg7[%c0_10, %c0_11] : memref<16x32xf32, #tpu.memory_space<vmem>>, vector<16x32xf32>
      %c0_12 = arith.constant 0 : index
      %c0_13 = arith.constant 0 : index
      %13 = vector.load %arg5[%c0_12, %c0_13] : memref<1x32xf32, #tpu.memory_space<vmem>>, vector<1x32xf32>
      %14 = vector.broadcast %13 : vector<1x32xf32> to vector<16x32xf32>
      %15 = arith.addf %12, %14 : vector<16x32xf32>
      %c0_14 = arith.constant 0 : index
      %c0_15 = arith.constant 0 : index
      %16 = vector.load %arg6[%c0_14, %c0_15] : memref<16x32xf32, #tpu.memory_space<vmem>>, vector<16x32xf32>
      tpu.vector_store %arg6[%c0_14, %c0_15], %15 {strides = array<i32>} : memref<16x32xf32, #tpu.memory_space<vmem>>, vector<16x32xf32>,
    } else {
    }
    return
  }
  func.func @transform_0(%arg0: i32, %arg1: i32, %arg2: i32) -> (i32, i32) {
    %c0_i32 = arith.constant 0 : i32
    return %arg0, %arg2 : i32, i32
  }
  func.func @transform_1(%arg0: i32, %arg1: i32, %arg2: i32) -> (i32, i32) {
    %c0_i32 = arith.constant 0 : i32
    return %arg2, %arg1 : i32, i32
  }
  func.func @transform_2(%arg0: i32, %arg1: i32, %arg2: i32) -> (i32, i32) {
    %c0_i32 = arith.constant 0 : i32
    %c0_i32_0 = arith.constant 0 : i32
    return %c0_i32, %arg1 : i32, i32
  }
  func.func @transform_3(%arg0: i32, %arg1: i32, %arg2: i32) -> (i32, i32) {
    %c0_i32 = arith.constant 0 : i32
    return %arg0, %arg1 : i32, i32
  }
}

</mosaic_0001>

<llo_original>
// kernel: tpu_custom_call.1
$region0: #{tpu_custom_call.1}
  #allocation0 [shape = 'u32[]', space=smem, size = 0x4, offset = 0x4, fixed_abs, tag = 'smem constant byte address 0x4 - core index']
  #allocation1 [shape = 'u32[144,128]{1,0:T(1,128)}', space=vmem, size = 0x12000, scoped, tag = 'internal scratch']
  #allocation2 [shape = 'f32[16,32]{1,0:T(8,128)}', space=vmem, size = 0x2000, scoped, tag = 'scratch operand']
  %s0 = inlined_call_operand.hbm [shape: bf16[16,32], index: 0, kind: input, shape index: {}]
  %s1 = inlined_call_operand.hbm [shape: bf16[32,32], index: 1, kind: input, shape index: {}]
  %s2 = inlined_call_operand.vmem [shape: f32[1,32], index: 2, kind: input, shape index: {}]
  %s3 = inlined_call_operand.hbm [shape: f32[16,32], index: 3, kind: output, shape index: {}]
  %s4 = sld [smem:[#allocation0]]
  $region38: #{tpu_custom_call.1} parent=0
    _
  %s6 = ssub.s32 1, %s4
  %s7 = scalar_select 0, %s6, %s4
  $region1: #{tpu_custom_call.1} parent=0
    #allocation3 [shape = 'u8[4096]{0}', space=vmem, size = 0x1000, scoped, tag = 'input window, operand 0, single buffered']
    #allocation4 [shape = 's32[1]{0}', space=sflag, size = 0x4, scoped, tag = 'scoped memory for tpu_custom_call.1']
    #allocation5 [shape = 's32[1]{0}', space=sflag, size = 0x4, scoped, tag = 'scoped memory for tpu_custom_call.1']
    #allocation6 [shape = 'u8[8192]{0}', space=vmem, size = 0x2000, scoped, tag = 'input window, operand 1, single buffered']
    #allocation7 [shape = 's32[1]{0}', space=sflag, size = 0x4, scoped, tag = 'scoped memory for tpu_custom_call.1']
    #allocation8 [shape = 'u8[8192]{0}', space=vmem, size = 0x2000, scoped, tag = 'output window, operand 0, single buffered']
    %8 = vsyncpa [#allocation4], 0
    %9 = vsyncpa [#allocation7], 0
    %10 = vsyncpa [#allocation5], 0
    // Predicated region
    $region2: #{tpu_custom_call.1} parent=1 // pred_check
      _
    $region3: #{tpu_custom_call.1} parent=1 // pred_check_branch
      %12 = sbr.rel (0) target = $region5
    $region4: #{tpu_custom_call.1} parent=1 // pred_region
      %s14 = ssub.s32 128, 128
      %15 = vsyncadd [#allocation4], %s14
      %s16 = sshll.u32 [#allocation3], 4
      %s17 = int_to_ptr.vmem [resolvable:$true] %s16
      %22 = dma.hbm_to_vmem [thread:$0]  %s0, 128, %s17, [#allocation4], 64, 64, 4
    $region5: #{tpu_custom_call.1} parent=1 // pred_fallthru
      _
    // Predicated region
    $region6: #{tpu_custom_call.1} parent=1 // pred_check
      _
    $region7: #{tpu_custom_call.1} parent=1 // pred_check_branch
      %24 = sbr.rel (0) target = $region9
    $region8: #{tpu_custom_call.1} parent=1 // pred_region
      %s26 = ssub.s32 256, 256
      %27 = vsyncadd [#allocation7], %s26
      %s28 = sshll.u32 [#allocation6], 4
      %s29 = int_to_ptr.vmem [resolvable:$true] %s28
      %34 = dma.hbm_to_vmem [thread:$0]  %s1, 256, %s29, [#allocation7], 64, 64, 4
    $region9: #{tpu_custom_call.1} parent=1 // pred_fallthru
      _
    // Predicated region
    $region10: #{tpu_custom_call.1} parent=1 // pred_check
      _
    $region11: #{tpu_custom_call.1} parent=1 // pred_check_branch
      %36 = sbr.rel (0) target = $region13
    $region12: #{tpu_custom_call.1} parent=1 // pred_region
      _
    $region13: #{tpu_custom_call.1} parent=1 // pred_fallthru
      _
    // Predicated region
    $region14: #{tpu_custom_call.1} parent=1 // pred_check
      _
    $region15: #{tpu_custom_call.1} parent=1 // pred_check_branch
      %38 = sbr.rel (0) target = $region17
    $region16: #{tpu_custom_call.1} parent=1 // pred_region
      %39 = dma.done [#allocation4], 128
    $region17: #{tpu_custom_call.1} parent=1 // pred_fallthru
      _
    // Predicated region
    $region18: #{tpu_custom_call.1} parent=1 // pred_check
      _
    $region19: #{tpu_custom_call.1} parent=1 // pred_check_branch
      %41 = sbr.rel (0) target = $region21
    $region20: #{tpu_custom_call.1} parent=1 // pred_region
      %42 = dma.done [#allocation7], 256
    $region21: #{tpu_custom_call.1} parent=1 // pred_fallthru
      _
    %p44 = scmp.eq.s32.totalorder 0, 0
    // Predicated region
    $region22: #{tpu_custom_call.1} parent=1 // pred_check
      %p45 = pneg %p44
    $region23: #{tpu_custom_call.1} parent=1 // pred_check_branch
      %47 = sbr.rel (%p45) target = $region25
    $region24: #{tpu_custom_call.1} parent=1 // pred_region
      %vm48 = vcmask 261120
      %49 = vst.msk [vmem:[#allocation2] sm:$0xff] %vm48, 0.0
      %50 = vst.msk [vmem:[#allocation2 + $0x8] sm:$0xff] %vm48, 0.0
    $region25: #{tpu_custom_call.1} parent=1 // pred_fallthru
      _
    %v51 = vld [vmem:[#allocation2] sm:$0xff]
    %v52 = vld [vmem:[#allocation2 + $0x8] sm:$0xff]
    %v53 = vld [vmem:[#allocation3] sm:$0xf]
    %v54 = vld [vmem:[#allocation3 + $0x4] sm:$0xf]
    %v55 = vld [vmem:[#allocation6] sm:$0xf]
    %v56 = vld [vmem:[#allocation6 + $0x4] sm:$0xf]
    %v57 = vld [vmem:[#allocation6 + $0x8] sm:$0xf]
    %v58 = vld [vmem:[#allocation6 + $0xc] sm:$0xf]
    %v61 = vunpack.c.l.b16 %v53
    %v62 = vunpack.c.l.b16 %v54
    %v63 = vpack.c.b16 %v62, %v61
    %v68 = vunpack.c.l.b16 %v55
    %v69 = vunpack.c.l.b16 %v56
    %v70 = vunpack.c.l.b16 %v57
    %v71 = vunpack.c.l.b16 %v58
    %v72 = vpack.c.b16 %v69, %v68
    %v73 = vpack.c.b16 %v71, %v70
    %vm76 = vcmask 261120
    %v78 = vsel %vm76, %v63, 0
    %80 = vmatprep.subr.bf16.mxu0 0
    %81 = vmatpush1.bf16.msra.mxu0 %v72
    %82 = vmatprep.subr.bf16.mxu0 0
    %83 = vmatpush1.bf16.msra.mxu0 %v73
    %84 = vmatprep.subr.bf16.mxu0 0
    %85 = vmatpush1.bf16.msra.mxu0 0
    %86 = vmatprep.subr.bf16.mxu0 0
    %87 = vmatpush1.bf16.msra.mxu0 0
    %88 = vmatprep.subr.bf16.mxu0 0
    %89 = vmatpush1.bf16.msra.mxu0 0
    %90 = vmatprep.subr.bf16.mxu0 0
    %91 = vmatpush1.bf16.msra.mxu0 0
    %92 = vmatprep.subr.bf16.mxu0 0
    %93 = vmatpush1.bf16.msra.mxu0 0
    %94 = vmatprep.subr.bf16.mxu0 0
    %95 = vmatpush1.bf16.msra.mxu0 0
    %96 = vmatprep.subr.bf16.mxu0 0
    %97 = vmatpush1.bf16.msra.mxu0 0
    %98 = vmatprep.subr.bf16.mxu0 0
    %99 = vmatpush1.bf16.msra.mxu0 0
    %100 = vmatprep.subr.bf16.mxu0 0
    %101 = vmatpush1.bf16.msra.mxu0 0
    %102 = vmatprep.subr.bf16.mxu0 0
    %103 = vmatpush1.bf16.msra.mxu0 0
    %104 = vmatprep.subr.bf16.mxu0 0
    %105 = vmatpush1.bf16.msra.mxu0 0
    %106 = vmatprep.subr.bf16.mxu0 0
    %107 = vmatpush1.bf16.msra.mxu0 0
    %108 = vmatprep.subr.bf16.mxu0 0
    %109 = vmatpush1.bf16.msra.mxu0 0
    %110 = vmatprep.subr.bf16.mxu0 0
    %111 = vmatpush1.bf16.msra.mxu0 0
    %112 = vmatprep.mubr.bf16.mxu0 0
    %113 = vmatmul.mubr.bf16.gmra.mrb[0].mxu0 %v78
    %v114 = vpop.f32.mrb[0].mxu0
    %v115 = vadd.f32 0.0, %v114
    %v116 = vpop.f32.mrb[0].mxu0
    %v117 = vpop.f32.mrb[0].mxu0
    %v118 = vadd.f32 0.0, %v117
    %v119 = vpop.f32.mrb[0].mxu0
    %120 = vdwg.mxu0
    %v121 = vadd.f32 %v51, %v115
    %v122 = vadd.f32 %v52, %v118
    %123 = vst.msk [vmem:[#allocation2] sm:$0xff] %vm76, %v121
    %124 = vst.msk [vmem:[#allocation2 + $0x8] sm:$0xff] %vm76, %v122
    // Predicated region
    $region26: #{tpu_custom_call.1} parent=1 // pred_check
      %p125 = pneg %p44
    $region27: #{tpu_custom_call.1} parent=1 // pred_check_branch
      %127 = sbr.rel (%p125) target = $region29
    $region28: #{tpu_custom_call.1} parent=1 // pred_region
      %v128 = vld [vmem:[#allocation2] sm:$0xff]
      %v129 = vld [vmem:[#allocation2 + $0x8] sm:$0xff]
      %v130 = vld [vmem:[%s2] sm:$0x1]
      %v132 = vlaneseq
      %v133 = vshrl.u32 %v132, 7
      %v134 = vsub.s32 0, %v133
      %v135 = vrot.slane %v130, %v134
      %v137 = vadd.f32 %v128, %v135
      %v138 = vadd.f32 %v129, %v135
      %139 = vst.msk [vmem:[#allocation8] sm:$0xff] %vm76, %v137
      %140 = vst.msk [vmem:[#allocation8 + $0x8] sm:$0xff] %vm76, %v138
    $region29: #{tpu_custom_call.1} parent=1 // pred_fallthru
      _
    // Predicated region
    $region30: #{tpu_custom_call.1} parent=1 // pred_check
      _
    $region31: #{tpu_custom_call.1} parent=1 // pred_check_branch
      %142 = sbr.rel (0) target = $region33
    $region32: #{tpu_custom_call.1} parent=1 // pred_region
      %s144 = ssub.s32 256, 256
      %145 = vsyncadd [#allocation5], %s144
      %s146 = sshll.u32 [#allocation8], 4
      %s147 = int_to_ptr.vmem [resolvable:$true] %s146
      %152 = dma.vmem_to_hbm [thread:$0]  %s147, 256, %s3, [#allocation5], 128, 128, 8
    $region33: #{tpu_custom_call.1} parent=1 // pred_fallthru
      _
    // Predicated region
    $region34: #{tpu_custom_call.1} parent=1 // pred_check
      _
    $region35: #{tpu_custom_call.1} parent=1 // pred_check_branch
      %154 = sbr.rel (0) target = $region37
    $region36: #{tpu_custom_call.1} parent=1 // pred_region
      %155 = dma.done [#allocation5], 256
    $region37: #{tpu_custom_call.1} parent=1 // pred_fallthru
      _
    %156 = vsyncpa [#allocation4], 1
    %157 = vsyncpa [#allocation7], 1
    %158 = vsyncpa [#allocation5], 1

</llo_original>
